<compile_context>
chip_gen: v7x
topology: tpu7x:2x2x1
jax: 0.10.0
libtpu: 0.0.40
codegen_flags: <defaults>
</compile_context>

<pallas_src>
import functools

import jax
import jax.numpy as jnp
from jax import lax
from jax.experimental import pallas as pl
from jax.experimental.pallas import tpu as pltpu


def _round_up(a, b):
    return (a + b - 1) // b * b


def _vmem_capacity_bytes():
    try:
        return int(pltpu.get_tpu_info().vmem_capacity_bytes)
    except Exception:
        return 64 * 1024 * 1024          # conservative (v7x per-TensorCore)


def _choose_tiling(m, k, cout, act_bytes, out_bytes, vmem_cap, target_rows=2048):
    """Pick (tile_m, padded_m).

    tile_m is a multiple of 128 whenever it actually tiles M (lane-dense output
    stores, legal block shapes); otherwise it is the 8-rounded full extent.
    The budget is keyed to this chip's VMEM capacity.
    """
    if m < 128:
        tm = _round_up(max(m, 8), 8)
        return tm, tm
    budget = min(32 * 1024 * 1024, vmem_cap // 4)
    # double-buffered in/out blocks + f32 prologue intermediates, per row
    bytes_per_row = 2 * (k * act_bytes + cout * out_bytes) + 3 * k * 4
    cap = max(128, min(budget // bytes_per_row, target_rows))
    cap = (cap // 128) * 128
    best = 0
    t = 128
    while t <= cap:
        if m % t == 0:
            best = t
        t += 128
    if best >= 128:
        return best, m
    tm = min(cap, _round_up(m, 128))
    return tm, _round_up(m, tm)


# ----------------------------------------------------------------------------
# Pallas kernel: fused BN(eval) + ReLU + 2x2 avg-pool + 1x1 conv
# ----------------------------------------------------------------------------
def _transition_kernel(x_ref, s_ref, b_ref, w_ref, o_ref, *, fold_phases, cin):
    """One (batch, M-tile) block.

    x_ref: (1, TM, 4*Cin)  pooling-phase-major channels-last activations (bf16/f32)
    s_ref: (1, K)          folded BN scale (K = 4*Cin if fold_phases else Cin), f32
    b_ref: (1, K)          folded BN bias, f32
    w_ref: (Cout, K)       1x1 conv weight with the pool's 1/4 pre-folded
    o_ref: (1, Cout, TM)   channel-major (NCHW-compatible) output tile
    """
    s = s_ref[...]
    b = b_ref[...]
    if fold_phases:
        # BN + ReLU over all four phases at once (lane-dense, K = 4*Cin); the
        # 2x2 average is realized by the matmul's contraction over K.
        a = jnp.maximum(x_ref[0].astype(jnp.float32) * s + b, 0.0)
    else:
        # Large Cin: commute the (linear) pool in front of the bias-free conv —
        # BN+ReLU each phase, VPU-sum, matmul with K = Cin (4x fewer MXU FLOPs).
        xall = x_ref[0]
        parts = []
        for p in range(4):
            xp = xall[:, p * cin:(p + 1) * cin].astype(jnp.float32)
            parts.append(jnp.maximum(xp * s + b, 0.0))
        a = (parts[0] + parts[1]) + (parts[2] + parts[3])

    lhs = a.astype(w_ref.dtype)
    # (Cout, K) x (TM, K)^T -> (Cout, TM): channel-major result, so the NCHW
    # output needs no post-kernel transpose.  f32 accumulation on the MXU.
    acc = lax.dot_general(w_ref[...], lhs,
                          dimension_numbers=(((1,), (1,)), ((), ())),
                          preferred_element_type=jnp.float32)
    o_ref[0] = acc.astype(o_ref.dtype)


# ----------------------------------------------------------------------------
# Wrapper
# ----------------------------------------------------------------------------
def transition_block_forward(x_nchw, params, *, eps=1e-5,
                             use_bf16=True, out_dtype=jnp.float32):
    """TransitionBlock forward: AvgPool2d(2,2)(Conv1x1(ReLU(BatchNorm2d(x)))).

    x_nchw: (N, Cin, H, W) float32 (NCHW, as in PyTorch).
    params: {'gamma','beta','running_mean','running_var': (Cin,), 'conv_w': (Cout,Cin,1,1)}
    Returns (N, Cout, H//2, W//2) in `out_dtype`.  Odd H/W are cropped (floor),
    matching AvgPool2d(2,2).  Eval-mode BatchNorm only.
    """
    gamma = params["gamma"].astype(jnp.float32)
    beta = params["beta"].astype(jnp.float32)
    mean = params["running_mean"].astype(jnp.float32)
    var = params["running_var"].astype(jnp.float32)
    conv_w = params["conv_w"]

    N, Cin, H, W = x_nchw.shape
    Cout = conv_w.shape[0]
    Ho, Wo = H // 2, W // 2
    M = Ho * Wo

    act_dtype = jnp.bfloat16 if use_bf16 else jnp.float32
    mm_dtype = jnp.bfloat16 if use_bf16 else jnp.float32

    # Fold eval-mode BN into per-channel scale/bias; fold the avg-pool's 1/4
    # into the bias-free 1x1 conv weight (exact: both linear, 1/4 is a pow2).
    scale = gamma * lax.rsqrt(var + eps)
    bias = beta - mean * scale
    w_oc = conv_w.reshape(Cout, Cin).astype(jnp.float32) * 0.25

    # Small Cin: fold the four phases into the contraction dim.  Large,
    # 128-aligned Cin: keep K = Cin and sum phases on the VPU.
    fold_phases = (Cin % 128 != 0) or (Cin <= 256)
    K = 4 * Cin
    if fold_phases:
        w_mat = jnp.tile(w_oc, (1, 4))                 # (Cout, 4*Cin)
        s_vec = jnp.tile(scale, 4).reshape(1, K)
        b_vec = jnp.tile(bias, 4).reshape(1, K)
        kdim = K
    else:
        w_mat = w_oc                                   # (Cout, Cin)
        s_vec = scale.reshape(1, Cin)
        b_vec = bias.reshape(1, Cin)
        kdim = Cin
    w_mat = w_mat.astype(mm_dtype)

    # The single layout pass this NCHW input needs anyway, done in bf16:
    # NCHW -> (N, Ho*Wo, 4*Cin), pooling-phase-major inside the channel axis.
    x = x_nchw[:, :, :2 * Ho, :2 * Wo].astype(act_dtype)
    x = x.reshape(N, Cin, Ho, 2, Wo, 2)
    x = jnp.transpose(x, (0, 2, 4, 3, 5, 1)).reshape(N, M, K)

    vmem_cap = _vmem_capacity_bytes()
    act_bytes = 2 if use_bf16 else 4
    out_bytes = jnp.dtype(out_dtype).itemsize
    tm, m_pad = _choose_tiling(M, K, Cout, act_bytes, out_bytes, vmem_cap)
    if m_pad > M:
        x = jnp.pad(x, ((0, 0), (0, m_pad - M), (0, 0)))
    grid = (N, m_pad // tm)

    x_blk = tm * K * act_bytes
    o_blk = Cout * tm * out_bytes
    const_b = Cout * kdim * (2 if use_bf16 else 4) + 2 * kdim * 4
    needed = 2 * (x_blk + o_blk) + 2 * const_b + 3 * tm * K * 4 + (4 << 20)
    vmem_limit = int(min(max(needed, 32 << 20), int(0.8 * vmem_cap)))

    kernel = functools.partial(_transition_kernel,
                               fold_phases=fold_phases, cin=Cin)

    out = pl.pallas_call(
        kernel,
        out_shape=jax.ShapeDtypeStruct((N, Cout, m_pad), out_dtype),
        grid_spec=pltpu.PrefetchScalarGridSpec(
            num_scalar_prefetch=0,
            grid=grid,
            in_specs=[
                pl.BlockSpec((1, tm, K), lambda n, i: (n, i, 0)),
                pl.BlockSpec((1, kdim), lambda n, i: (0, 0)),
                pl.BlockSpec((1, kdim), lambda n, i: (0, 0)),
                pl.BlockSpec((Cout, kdim), lambda n, i: (0, 0)),
            ],
            out_specs=pl.BlockSpec((1, Cout, tm), lambda n, i: (n, 0, i)),
        ),
        compiler_params=pltpu.CompilerParams(
            dimension_semantics=("parallel", "parallel"),
            vmem_limit_bytes=vmem_limit,
        ),
    )(x, s_vec, b_vec, w_mat)

    if m_pad > M:
        out = out[:, :, :M]
    # Output is already channel-major (NCHW) -> free reshape, no transpose pass.
    return out.reshape(N, Cout, Ho, Wo)


# ----------------------------------------------------------------------------
# Pure-JAX reference (exact PyTorch op order) for a sanity check
# ----------------------------------------------------------------------------
def _reference_forward(x, params, eps=1e-5):
    gamma, beta = params["gamma"], params["beta"]
    mean, var = params["running_mean"], params["running_var"]
    w = params["conv_w"]
    xn = ((x - mean[None, :, None, None])
          * (gamma / jnp.sqrt(var + eps))[None, :, None, None]
          + beta[None, :, None, None])
    xr = jnp.maximum(xn, 0.0)
    y = jnp.einsum("nchw,oc->nohw", xr, w[:, :, 0, 0])
    n, o, h, wd = y.shape
    y = y[:, :, : h // 2 * 2, : wd // 2 * 2]
    return y.reshape(n, o, h // 2, 2, wd // 2, 2).mean(axis=(3, 5))


if __name__ == "__main__":
    key = jax.random.PRNGKey(0)
    kx, kw, kg, kb, km, kv = jax.random.split(key, 6)

    N, Cin, H, W = 2, 64, 16, 16
    Cout = 128

    x = jax.random.normal(kx, (N, Cin, H, W), jnp.float32)
    params = {
        "conv_w": jax.random.normal(kw, (Cout, Cin, 1, 1), jnp.float32) * 0.05,
        "gamma": 1.0 + 0.1 * jax.random.normal(kg, (Cin,), jnp.float32),
        "beta": 0.1 * jax.random.normal(kb, (Cin,), jnp.float32),
        "running_mean": 0.1 * jax.random.normal(km, (Cin,), jnp.float32),
        "running_var": 0.5 + jax.random.uniform(kv, (Cin,), jnp.float32),
    }

    ref = _reference_forward(x, params)

    # Fast (bf16-activation) path.
    fwd = jax.jit(functools.partial(transition_block_forward, use_bf16=True))
    out = jax.block_until_ready(fwd(x, params))
    assert out.shape == (N, Cout, H // 2, W // 2), out.shape
    assert bool(jnp.all(jnp.isfinite(out)))
    assert bool(jnp.allclose(out, ref, rtol=5e-2, atol=5e-2)), \
        float(jnp.max(jnp.abs(out - ref)))

    # Parity (f32) path.
    fwd32 = jax.jit(functools.partial(transition_block_forward, use_bf16=False))
    out32 = jax.block_until_ready(fwd32(x, params))
    assert bool(jnp.allclose(out32, ref, rtol=1e-3, atol=1e-3)), \
        float(jnp.max(jnp.abs(out32 - ref)))

    print("KERNEL_OK")
</pallas_src>

<mosaic_0001>
module attributes {stable_mosaic.version = 11 : i64} {
  func.func @_transition_kernel(%arg0: i32, %arg1: i32, %arg2: memref<1x64x256xbf16, #tpu.memory_space<vmem>>, %arg3: memref<1x256xf32, #tpu.memory_space<vmem>>, %arg4: memref<1x256xf32, #tpu.memory_space<vmem>>, %arg5: memref<128x256xbf16, #tpu.memory_space<vmem>>, %arg6: memref<1x128x64xf32, #tpu.memory_space<vmem>>) attributes {dimension_semantics = [#tpu.dimension_semantics<parallel>, #tpu.dimension_semantics<parallel>], iteration_bounds = array<i64: 2, 1>, scalar_prefetch = 0 : i64, scratch_operands = 0 : i64, tpu.core_type = #tpu.core_type<tc>, window_params = [{transform_indices = @transform_0, window_bounds = array<i64: 1, 64, 256>}, {pipeline_mode = #tpu.pipeline_mode<synchronous>, transform_indices = @transform_1, window_bounds = array<i64: 1, 256>}, {pipeline_mode = #tpu.pipeline_mode<synchronous>, transform_indices = @transform_2, window_bounds = array<i64: 1, 256>}, {pipeline_mode = #tpu.pipeline_mode<synchronous>, transform_indices = @transform_3, window_bounds = array<i64: 128, 256>}, {transform_indices = @transform_4, window_bounds = array<i64: 1, 128, 64>}]} {
    %c0 = arith.constant 0 : index
    %c0_0 = arith.constant 0 : index
    %0 = vector.load %arg3[%c0, %c0_0] : memref<1x256xf32, #tpu.memory_space<vmem>>, vector<1x256xf32>
    %c0_1 = arith.constant 0 : index
    %c0_2 = arith.constant 0 : index
    %1 = vector.load %arg4[%c0_1, %c0_2] : memref<1x256xf32, #tpu.memory_space<vmem>>, vector<1x256xf32>
    %c0_3 = arith.constant 0 : index
    %c0_4 = arith.constant 0 : index
    %c0_5 = arith.constant 0 : index
    %2 = vector.load %arg2[%c0_3, %c0_4, %c0_5] : memref<1x64x256xbf16, #tpu.memory_space<vmem>>, vector<1x64x256xbf16>
    %3 = vector.shape_cast %2 : vector<1x64x256xbf16> to vector<64x256xbf16>
    %4 = arith.extf %3 : vector<64x256xbf16> to vector<64x256xf32>
    %5 = vector.broadcast %0 : vector<1x256xf32> to vector<64x256xf32>
    %6 = arith.mulf %4, %5 : vector<64x256xf32>
    %7 = vector.broadcast %1 : vector<1x256xf32> to vector<64x256xf32>
    %8 = arith.addf %6, %7 : vector<64x256xf32>
    %cst = arith.constant 0.000000e+00 : f32
    %9 = vector.broadcast %cst : f32 to vector<64x256xf32>
    %10 = arith.maximumf %8, %9 : vector<64x256xf32>
    %11 = arith.truncf %10 : vector<64x256xf32> to vector<64x256xbf16>
    %c0_6 = arith.constant 0 : index
    %c0_7 = arith.constant 0 : index
    %12 = vector.load %arg5[%c0_6, %c0_7] : memref<128x256xbf16, #tpu.memory_space<vmem>>, vector<128x256xbf16>
    %cst_8 = arith.constant dense<0.000000e+00> : vector<128x64xf32>
    %13 = tpu.matmul %12, %11, %cst_8 {dimension_numbers = #tpu.dot_dimension_numbers<[1], [1], [0], [0], [0, 0, 1, 0], [], []>} : vector<128x256xbf16>, vector<64x256xbf16>, vector<128x64xf32> -> vector<128x64xf32>
    %c0_9 = arith.constant 0 : index
    %c0_10 = arith.constant 0 : index
    %c0_11 = arith.constant 0 : index
    %14 = vector.load %arg6[%c0_9, %c0_10, %c0_11] : memref<1x128x64xf32, #tpu.memory_space<vmem>>, vector<1x128x64xf32>
    %15 = vector.shape_cast %14 : vector<1x128x64xf32> to vector<128x64xf32>
    %16 = vector.shape_cast %13 : vector<128x64xf32> to vector<1x128x64xf32>
    tpu.vector_store %arg6[%c0_9, %c0_10, %c0_11], %16 {strides = array<i32>} : memref<1x128x64xf32, #tpu.memory_space<vmem>>, vector<1x128x64xf32>,
    return
  }
  func.func @transform_0(%arg0: i32, %arg1: i32) -> (i32, i32, i32) {
    %c0_i32 = arith.constant 0 : i32
    %c0_i32_0 = arith.constant 0 : i32
    return %arg0, %arg1, %c0_i32 : i32, i32, i32
  }
  func.func @transform_1(%arg0: i32, %arg1: i32) -> (i32, i32) {
    %c0_i32 = arith.constant 0 : i32
    %c0_i32_0 = arith.constant 0 : i32
    %c0_i32_1 = arith.constant 0 : i32
    return %c0_i32, %c0_i32_0 : i32, i32
  }
  func.func @transform_2(%arg0: i32, %arg1: i32) -> (i32, i32) {
    %c0_i32 = arith.constant 0 : i32
    %c0_i32_0 = arith.constant 0 : i32
    %c0_i32_1 = arith.constant 0 : i32
    return %c0_i32, %c0_i32_0 : i32, i32
  }
  func.func @transform_3(%arg0: i32, %arg1: i32) -> (i32, i32) {
    %c0_i32 = arith.constant 0 : i32
    %c0_i32_0 = arith.constant 0 : i32
    %c0_i32_1 = arith.constant 0 : i32
    return %c0_i32, %c0_i32_0 : i32, i32
  }
  func.func @transform_4(%arg0: i32, %arg1: i32) -> (i32, i32, i32) {
    %c0_i32 = arith.constant 0 : i32
    %c0_i32_0 = arith.constant 0 : i32
    return %arg0, %c0_i32, %arg1 : i32, i32, i32
  }
}

</mosaic_0001>

<llo_original>
// kernel: tile.23
$region0: #{tile.23}
  #allocation0 [shape = 's32[1]{0}', space=sflag, size = 0x4, scoped, tag = 'scoped memory for tile.23']
  %s0 = inlined_call_operand.vmem [shape: f32[64], index: 0, kind: input, shape index: {}]
  %s1 = inlined_call_operand.vmem [shape: f32[4,64], index: 1, kind: output, shape index: {}]
  // Predicated region
  $region2: #{tile.23} parent=0 // pred_check
    _
  $region3: #{tile.23} parent=0 // pred_check_branch
    %3 = sbr.rel (0) target = $region5
  $region4: #{tile.23} parent=0 // pred_region
    _
  $region5: #{tile.23} parent=0 // pred_fallthru
    _
  %v4 = vld [vmem:[%s0] ss:$0 sm:$0xff]
  %5 = vst [vmem:[%s1] sm:$0xf] %v4

// kernel: tile.24
$region0: #{tile.24}
  %s0 = inlined_call_operand.vmem [shape: f32[4,64], index: 0, kind: input, shape index: {}]
  %s1 = inlined_call_operand.vmem [shape: f32[1,256], index: 1, kind: output, shape index: {}]
  $region1: #{tile.24} parent=0
    #allocation0 [shape = 'u8[8192]{0}', space=vmem, size = 0x2000, scoped, tag = 'scoped mem for output reshape']
    #allocation1 [shape = 'u8[4096]{0}', space=vmem, size = 0x1000, scoped, tag = 'scoped mem for input reshape']
    %s3 = sshllo.u32 0, 4
    %v4 = vld [vmem:[%s0] sm:%s3]
    %5 = vst [vmem:[#allocation1] sm:%s3] %v4
    %s6 = smov 3
    %v7 = vld [vmem:[#allocation1] ss:$2 sm:%s6]
    %vm8 = vcmask 523264
    %9 = vst.msk [vmem:[#allocation0] ss:$8 sm:$0x3] %vm8, %v7
    %s10 = scalar_lea.vmem [#allocation1], 1
    %s11 = smov 3
    %v12 = vld [vmem:[%s10] ss:$2 sm:%s11]
    %13 = vrot.lane.b32.xlu0 %v12, 64
    %v14 = vpop.permute.xlu0 %13
    %vm15 = vcmask 1048064
    %16 = vst.msk [vmem:[#allocation0] ss:$8 sm:$0x3] %vm15, %v14
    %s18 = sshllo.u32 0, 1
    %v20 = vld [vmem:[#allocation0] sm:%s18]
    %s21 = sshllo.u32 0, 1
    %22 = vst [vmem:[%s1] sm:%s21] %v20
    %s23 = scalar_lea.vmem [#allocation0], 8
    %v24 = vld [vmem:[%s23] sm:%s18]
    %s25 = sshllo.u32 0, 1
    %s26 = scalar_lea.vmem %s1, 1
    %27 = vst [vmem:[%s26] sm:%s25] %v24

// kernel: transition_block_forward.1
$region0: #{transition_block_forward.1}
  #allocation0 [shape = 'u32[]', space=smem, size = 0x4, offset = 0x4, fixed_abs, tag = 'smem constant byte address 0x4 - core index']
  #allocation1 [shape = 'u32[144,128]{1,0:T(1,128)}', space=vmem, size = 0x12000, scoped, tag = 'internal scratch']
  %s0 = inlined_call_operand.vmem [shape: bf16[2,64,256], index: 0, kind: input, shape index: {}]
  %s1 = inlined_call_operand.vmem [shape: f32[1,256], index: 1, kind: input, shape index: {}]
  %s2 = inlined_call_operand.vmem [shape: f32[1,256], index: 2, kind: input, shape index: {}]
  %s3 = inlined_call_operand.vmem [shape: bf16[128,256], index: 3, kind: input, shape index: {}]
  %s4 = inlined_call_operand.vmem [shape: f32[2,128,64], index: 4, kind: output, shape index: {}]
  %s5 = sld [smem:[#allocation0]]
  $region49: #{transition_block_forward.1} parent=0
    _
  %s7 = ssub.s32 1, %s5
  %s8 = scalar_select 0, %s7, %s5
  loop: start=0, step=1, limit=4
  $region2: #{transition_block_forward.1} parent=0 // loop_pre_header
    _
  $region3: #{transition_block_forward.1} parent=0 // loop_header
    %s10 = sphi 0, %s14
    %p11 = scmp.ge.s32.totalorder %s10, 4
    %s17 = sphi 0, %s29
    %s18 = sphi 0, %s25
    %s19 = sphi 0, %s17
    %s20 = sphi 0, %s18
    %s21 = sphi 0, %s19
    %s22 = sphi 0, %s20
    %s34 = sphi 0, %s36
    %s37 = sphi 0, %s34
    %s38 = sphi 0, %s37
    %s54 = sphi 0, %s38
    %s58 = sphi 0, %s58
    %s60 = sphi 0, %s58
    %s61 = sphi 0, %s60
    %s75 = sphi 0, %s61
    %s79 = sphi 0, %s79
    %s81 = sphi 0, %s79
    %s82 = sphi 0, %s81
    %s96 = sphi 0, %s82
    %s100 = sphi 0, %s100
    %s102 = sphi 0, %s100
    %s103 = sphi 0, %s102
    %s117 = sphi 0, %s103
    %s125 = sphi 0, %s127
    %s128 = sphi 0, %s125
    %s129 = sphi 0, %s128
    %s145 = sphi 0, %s129
  $region4: #{transition_block_forward.1} parent=0 // loop_header_branch
    %13 = sbr.rel (%p11) target = $region8
  $region5: #{transition_block_forward.1} parent=0 // loop_body
    %s15 = ssub.s32 %s10, 1
    %s16 = ssub.s32 %s10, 2
    %s23 = sadd.s32 1, %s18
    %p24 = scmp.ge.s32.totalorder %s23, 1
    %s25 = scalar_select %p24, 0, %s23
    %s26 = sadd.s32 1, %s17
    %s27 = scalar_select %p24, %s26, %s17
    %p28 = scmp.ge.s32.totalorder %s27, 2
    %s29 = scalar_select %p28, 0, %s27
    %s30 = ssub.s32 %s17, %s29
    %s31 = ssub.s32 %s18, %s25
    %s32 = sor.u32 %s30, %s31
    %p33 = scmp.eq.s32.totalorder %s32, 0
    %s35 = sadd.s32 %s34, 1
    %s36 = scalar_select %p33, %s34, %s35
    %p39 = pneg %p33
    %p40 = scmp.eq.s32.totalorder %s10, 1
    %p41 = por %p39, %p40
    %p42 = scmp.ne.s32.totalorder %s34, %s37
    %p43 = scmp.eq.s32.totalorder %s10, 0
    %p44 = por %p42, %p43
    %p45 = scmp.ne.s32.totalorder %s34, %s37
    %p46 = scmp.eq.s32.totalorder %s15, 1
    %p47 = por %p45, %p46
    %p48 = scmp.ne.s32.totalorder %s37, %s38
    %p49 = scmp.eq.s32.totalorder %s15, 0
    %p50 = por %p48, %p49
    %p51 = scmp.ne.s32.totalorder %s37, %s38
    %p52 = scmp.eq.s32.totalorder %s16, 1
    %p53 = por %p51, %p52
    %p55 = scmp.ne.s32.totalorder %s38, %s54
    %p56 = scmp.eq.s32.totalorder %s16, 0
    %p57 = por %p55, %p56
    %s59 = sadd.s32 %s58, 1
    %p62 = scmp.eq.s32.totalorder %s10, 1
    %p63 = scmp.ne.s32.totalorder %s58, %s60
    %p64 = scmp.eq.s32.totalorder %s10, 0
    %p65 = por %p63, %p64
    %p66 = scmp.ne.s32.totalorder %s58, %s60
    %p67 = scmp.eq.s32.totalorder %s15, 1
    %p68 = por %p66, %p67
    %p69 = scmp.ne.s32.totalorder %s60, %s61
    %p70 = scmp.eq.s32.totalorder %s15, 0
    %p71 = por %p69, %p70
    %p72 = scmp.ne.s32.totalorder %s60, %s61
    %p73 = scmp.eq.s32.totalorder %s16, 1
    %p74 = por %p72, %p73
    %p76 = scmp.ne.s32.totalorder %s61, %s75
    %p77 = scmp.eq.s32.totalorder %s16, 0
    %p78 = por %p76, %p77
    %s80 = sadd.s32 %s79, 1
    %p83 = scmp.eq.s32.totalorder %s10, 1
    %p84 = scmp.ne.s32.totalorder %s79, %s81
    %p85 = scmp.eq.s32.totalorder %s10, 0
    %p86 = por %p84, %p85
    %p87 = scmp.ne.s32.totalorder %s79, %s81
    %p88 = scmp.eq.s32.totalorder %s15, 1
    %p89 = por %p87, %p88
    %p90 = scmp.ne.s32.totalorder %s81, %s82
    %p91 = scmp.eq.s32.totalorder %s15, 0
    %p92 = por %p90, %p91
    %p93 = scmp.ne.s32.totalorder %s81, %s82
    %p94 = scmp.eq.s32.totalorder %s16, 1
    %p95 = por %p93, %p94
    %p97 = scmp.ne.s32.totalorder %s82, %s96
    %p98 = scmp.eq.s32.totalorder %s16, 0
    %p99 = por %p97, %p98
    %s101 = sadd.s32 %s100, 1
    %p104 = scmp.eq.s32.totalorder %s10, 1
    %p105 = scmp.ne.s32.totalorder %s100, %s102
    %p106 = scmp.eq.s32.totalorder %s10, 0
    %p107 = por %p105, %p106
    %p108 = scmp.ne.s32.totalorder %s100, %s102
    %p109 = scmp.eq.s32.totalorder %s15, 1
    %p110 = por %p108, %p109
    %p111 = scmp.ne.s32.totalorder %s102, %s103
    %p112 = scmp.eq.s32.totalorder %s15, 0
    %p113 = por %p111, %p112
    %p114 = scmp.ne.s32.totalorder %s102, %s103
    %p115 = scmp.eq.s32.totalorder %s16, 1
    %p116 = por %p114, %p115
    %p118 = scmp.ne.s32.totalorder %s103, %s117
    %p119 = scmp.eq.s32.totalorder %s16, 0
    %p120 = por %p118, %p119
    %s121 = ssub.s32 %s17, %s29
    %s122 = ssub.s32 %s18, %s25
    %s123 = sor.u32 %s121, %s122
    %p124 = scmp.eq.s32.totalorder %s123, 0
    %s126 = sadd.s32 %s125, 1
    %s127 = scalar_select %p124, %s125, %s126
    %p130 = pneg %p124
    %p131 = scmp.eq.s32.totalorder %s10, 1
    %p132 = por %p130, %p131
    %p133 = scmp.ne.s32.totalorder %s125, %s128
    %p134 = scmp.eq.s32.totalorder %s10, 0
    %p135 = por %p133, %p134
    %p136 = scmp.ne.s32.totalorder %s125, %s128
    %p137 = scmp.eq.s32.totalorder %s15, 1
    %p138 = por %p136, %p137
    %p139 = scmp.ne.s32.totalorder %s128, %s129
    %p140 = scmp.eq.s32.totalorder %s15, 0
    %p141 = por %p139, %p140
    %p142 = scmp.ne.s32.totalorder %s128, %s129
    %p143 = scmp.eq.s32.totalorder %s16, 1
    %p144 = por %p142, %p143
    %p146 = scmp.ne.s32.totalorder %s129, %s145
    %p147 = scmp.eq.s32.totalorder %s16, 0
    %p148 = por %p146, %p147
    %p149 = scmp.le.s32.totalorder 1, %s10
    %p150 = scmp.lt.s32.totalorder %s10, 3
    %p151 = pnand %p149, %p150
    %p152 = pneg %p151
    // Predicated region
    $region9: #{transition_block_forward.1} parent=5 // pred_check
      _
    $region10: #{transition_block_forward.1} parent=5 // pred_check_branch
      %154 = sbr.rel (%p151) target = $region12
    $region11: #{transition_block_forward.1} parent=5 // pred_region
      %s155 = ssub.s32 %s10, 1
      // Predicated region
      $region13: #{transition_block_forward.1} parent=11 // pred_check
        %p156 = pneg %p71
      $region14: #{transition_block_forward.1} parent=11 // pred_check_branch
        %158 = sbr.rel (%p156) target = $region16
      $region15: #{transition_block_forward.1} parent=11 // pred_region
        _
      $region16: #{transition_block_forward.1} parent=11 // pred_fallthru
        _
      // Predicated region
      $region17: #{transition_block_forward.1} parent=11 // pred_check
        %p159 = pneg %p92
      $region18: #{transition_block_forward.1} parent=11 // pred_check_branch
        %161 = sbr.rel (%p159) target = $region20
      $region19: #{transition_block_forward.1} parent=11 // pred_region
        _
      $region20: #{transition_block_forward.1} parent=11 // pred_fallthru
        _
      // Predicated region
      $region21: #{transition_block_forward.1} parent=11 // pred_check
        %p162 = pneg %p113
      $region22: #{transition_block_forward.1} parent=11 // pred_check_branch
        %164 = sbr.rel (%p162) target = $region24
      $region23: #{transition_block_forward.1} parent=11 // pred_region
        _
      $region24: #{transition_block_forward.1} parent=11 // pred_fallthru
        _
    $region12: #{transition_block_forward.1} parent=5 // pred_fallthru
      _
    %p165 = scmp.lt.s32.totalorder %s10, 2
    // Predicated region
    $region25: #{transition_block_forward.1} parent=5 // pred_check
      %p166 = pneg %p165
    $region26: #{transition_block_forward.1} parent=5 // pred_check_branch
      %168 = sbr.rel (%p166) target = $region28
    $region27: #{transition_block_forward.1} parent=5 // pred_region
      // Predicated region
      $region29: #{transition_block_forward.1} parent=27 // pred_check
        %p169 = pneg %p44
      $region30: #{transition_block_forward.1} parent=27 // pred_check_branch
        %171 = sbr.rel (%p169) target = $region32
      $region31: #{transition_block_forward.1} parent=27 // pred_region
        %s172 = smul.u32 8, %s18
        %p173 = scmp.lt.s32.totalorder %s17, 1
        %s174 = scalar_select %p173, %s17, 1
        %p175 = scmp.lt.s32.totalorder %s172, 7
        %s176 = scalar_select %p175, %s172, 7
        %s177 = smul.addr %s176, 2
        %s178 = smul.addr %s174, 16
        %s179 = sadd.s32 %s177, %s178
        %s180 = smul.addr %s179, 4
        %s181 = scalar_lea.vmem %s0, %s180
        %s182 = smul.u32 8, %s18
      $region32: #{transition_block_forward.1} parent=27 // pred_fallthru
        _
    $region28: #{transition_block_forward.1} parent=5 // pred_fallthru
      _
    %p183 = scmp.le.s32.totalorder 1, %s10
    %p184 = scmp.lt.s32.totalorder %s10, 3
    %p185 = pnand %p183, %p184
    %p186 = pneg %p185
    // Predicated region
    $region33: #{transition_block_forward.1} parent=5 // pred_check
      _
    $region34: #{transition_block_forward.1} parent=5 // pred_check_branch
      %188 = sbr.rel (%p185) target = $region36
    $region35: #{transition_block_forward.1} parent=5 // pred_region
      %s189 = ssub.s32 %s10, 1
      %s190 = smul.u32 8, %s20
      %p191 = scmp.lt.s32.totalorder %s19, 1
      %s192 = scalar_select %p191, %s19, 1
      %p193 = scmp.lt.s32.totalorder %s190, 7
      %s194 = scalar_select %p193, %s190, 7
      %s195 = smul.addr %s194, 2
      %s196 = smul.addr %s192, 16
      %s197 = sadd.s32 %s195, %s196
      %s198 = smul.addr %s197, 4
      %s199 = scalar_lea.vmem %s0, %s198
      %p200 = pneg %p50
      %p201 = pneg %p47
      %p202 = pneg %p71
      %p203 = pneg %p68
      %p204 = pneg %p92
      %p205 = pneg %p89
      %p206 = pneg %p113
      %p207 = pneg %p110
      %p208 = pneg %p141
      %p209 = pneg %p138
      %p210 = scmp.lt.s32.totalorder %s19, 1
      %s211 = scalar_select %p210, %s19, 1
      %p212 = scmp.lt.s32.totalorder %s20, 0
      %s213 = scalar_select %p212, %s20, 0
      %s214 = smul.addr %s211, 16
      %s215 = sadd.s32 %s213, %s214
      %s216 = smul.addr %s215, 8
      %s217 = scalar_lea.vmem %s4, %s216
      %s218 = smul.u32 8, %s20
      %p219 = scmp.lt.s32.totalorder %s19, 1
      %s220 = scalar_select %p219, %s19, 1
      %p221 = scmp.lt.s32.totalorder %s218, 7
      %s222 = scalar_select %p221, %s218, 7
      %s223 = smul.addr %s222, 2
      %s224 = smul.addr %s220, 16
      %s225 = sadd.s32 %s223, %s224
      %s226 = smul.addr %s225, 4
      %s227 = scalar_lea.vmem %s0, %s226
      %s228 = smul.u32 8, %s20
      %p229 = scmp.lt.s32.totalorder %s19, 1
      %s230 = scalar_select %p229, %s19, 1
      %p231 = scmp.lt.s32.totalorder %s20, 0
      %s232 = scalar_select %p231, %s20, 0
      %s233 = smul.addr %s230, 16
      %s234 = sadd.s32 %s232, %s233
      %s235 = smul.addr %s234, 8
      %s236 = scalar_lea.vmem %s4, %s235
      %v238 = vld [vmem:[%s1] sm:$0x3]
      %v239 = vld [vmem:[%s2] sm:$0x3]
      %v240 = vld [vmem:[%s227] sm:$0xff]
      %v241 = vld [vmem:[%s227 + $0x8] sm:$0xff]
      %v242 = vld [vmem:[%s227 + $0x10] sm:$0xff]
      %v243 = vld [vmem:[%s227 + $0x18] sm:$0xff]
      %v244 = vld [vmem:[%s227 + $0x20] sm:$0xff]
      %v245 = vld [vmem:[%s227 + $0x28] sm:$0xff]
      %v246 = vld [vmem:[%s227 + $0x30] sm:$0xff]
      %v247 = vld [vmem:[%s227 + $0x38] sm:$0xff]
      %v248 = vunpack.c.l.bf16 %v240
      %v249 = vunpack.c.h.bf16 %v240
      %v250 = vunpack.c.l.bf16 %v241
      %v251 = vunpack.c.h.bf16 %v241
      %v252 = vunpack.c.l.bf16 %v242
      %v253 = vunpack.c.h.bf16 %v242
      %v254 = vunpack.c.l.bf16 %v243
      %v255 = vunpack.c.h.bf16 %v243
      %v256 = vunpack.c.l.bf16 %v244
      %v257 = vunpack.c.h.bf16 %v244
      %v258 = vunpack.c.l.bf16 %v245
      %v259 = vunpack.c.h.bf16 %v245
      %v260 = vunpack.c.l.bf16 %v246
      %v261 = vunpack.c.h.bf16 %v246
      %v262 = vunpack.c.l.bf16 %v247
      %v263 = vunpack.c.h.bf16 %v247
      %v265 = vlaneseq
      %v266 = vshrl.u32 %v265, 7
      %v267 = vsub.s32 0, %v266
      %v268 = vrot.slane %v238, %v267
      %v269 = vlaneseq
      %v270 = vshrl.u32 %v269, 7
      %v271 = vsub.s32 1, %v270
      %v272 = vrot.slane %v238, %v271
      %v275 = vmul.f32 %v248, %v268
      %v276 = vmul.f32 %v249, %v272
      %v277 = vmul.f32 %v250, %v268
      %v278 = vmul.f32 %v251, %v272
      %v279 = vmul.f32 %v252, %v268
      %v280 = vmul.f32 %v253, %v272
      %v281 = vmul.f32 %v254, %v268
      %v282 = vmul.f32 %v255, %v272
      %v283 = vmul.f32 %v256, %v268
      %v284 = vmul.f32 %v257, %v272
      %v285 = vmul.f32 %v258, %v268
      %v286 = vmul.f32 %v259, %v272
      %v287 = vmul.f32 %v260, %v268
      %v288 = vmul.f32 %v261, %v272
      %v289 = vmul.f32 %v262, %v268
      %v290 = vmul.f32 %v263, %v272
      %v292 = vlaneseq
      %v293 = vshrl.u32 %v292, 7
      %v294 = vsub.s32 0, %v293
      %v295 = vrot.slane %v239, %v294
      %v296 = vlaneseq
      %v297 = vshrl.u32 %v296, 7
      %v298 = vsub.s32 1, %v297
      %v299 = vrot.slane %v239, %v298
      %v302 = vadd.f32 %v275, %v295
      %v303 = vadd.f32 %v276, %v299
      %v304 = vadd.f32 %v277, %v295
      %v305 = vadd.f32 %v278, %v299
      %v306 = vadd.f32 %v279, %v295
      %v307 = vadd.f32 %v280, %v299
      %v308 = vadd.f32 %v281, %v295
      %v309 = vadd.f32 %v282, %v299
      %v310 = vadd.f32 %v283, %v295
      %v311 = vadd.f32 %v284, %v299
      %v312 = vadd.f32 %v285, %v295
      %v313 = vadd.f32 %v286, %v299
      %v314 = vadd.f32 %v287, %v295
      %v315 = vadd.f32 %v288, %v299
      %v316 = vadd.f32 %v289, %v295
      %v317 = vadd.f32 %v290, %v299
      %v318 = vmax.f32 %v302, 0.0
      %v319 = vmax.f32 %v303, 0.0
      %v320 = vmax.f32 %v304, 0.0
      %v321 = vmax.f32 %v305, 0.0
      %v322 = vmax.f32 %v306, 0.0
      %v323 = vmax.f32 %v307, 0.0
      %v324 = vmax.f32 %v308, 0.0
      %v325 = vmax.f32 %v309, 0.0
      %v326 = vmax.f32 %v310, 0.0
      %v327 = vmax.f32 %v311, 0.0
      %v328 = vmax.f32 %v312, 0.0
      %v329 = vmax.f32 %v313, 0.0
      %v330 = vmax.f32 %v314, 0.0
      %v331 = vmax.f32 %v315, 0.0
      %v332 = vmax.f32 %v316, 0.0
      %v333 = vmax.f32 %v317, 0.0
      %v334 = vpack.c.bf16 %v320, %v318
      %v335 = vpack.c.bf16 %v321, %v319
      %v336 = vpack.c.bf16 %v324, %v322
      %v337 = vpack.c.bf16 %v325, %v323
      %v338 = vpack.c.bf16 %v328, %v326
      %v339 = vpack.c.bf16 %v329, %v327
      %v340 = vpack.c.bf16 %v332, %v330
      %v341 = vpack.c.bf16 %v333, %v331
      %v342 = vld [vmem:[%s3] sm:$0xff]
      %v343 = vld [vmem:[%s3 + $0x8] sm:$0xff]
      %v344 = vld [vmem:[%s3 + $0x10] sm:$0xff]
      %v345 = vld [vmem:[%s3 + $0x18] sm:$0xff]
      %v346 = vld [vmem:[%s3 + $0x20] sm:$0xff]
      %v347 = vld [vmem:[%s3 + $0x28] sm:$0xff]
      %v348 = vld [vmem:[%s3 + $0x30] sm:$0xff]
      %v349 = vld [vmem:[%s3 + $0x38] sm:$0xff]
      %v350 = vld [vmem:[%s3 + $0x40] sm:$0xff]
      %v351 = vld [vmem:[%s3 + $0x48] sm:$0xff]
      %v352 = vld [vmem:[%s3 + $0x50] sm:$0xff]
      %v353 = vld [vmem:[%s3 + $0x58] sm:$0xff]
      %v354 = vld [vmem:[%s3 + $0x60] sm:$0xff]
      %v355 = vld [vmem:[%s3 + $0x68] sm:$0xff]
      %v356 = vld [vmem:[%s3 + $0x70] sm:$0xff]
      %v357 = vld [vmem:[%s3 + $0x78] sm:$0xff]
      %v374 = vunpack.c.l.b16 %v342
      %v375 = vunpack.c.h.b16 %v342
      %v376 = vunpack.c.l.b16 %v343
      %v377 = vunpack.c.h.b16 %v343
      %v378 = vunpack.c.l.b16 %v344
      %v379 = vunpack.c.h.b16 %v344
      %v380 = vunpack.c.l.b16 %v345
      %v381 = vunpack.c.h.b16 %v345
      %v382 = vunpack.c.l.b16 %v346
      %v383 = vunpack.c.h.b16 %v346
      %v384 = vunpack.c.l.b16 %v347
      %v385 = vunpack.c.h.b16 %v347
      %v386 = vunpack.c.l.b16 %v348
      %v387 = vunpack.c.h.b16 %v348
      %v388 = vunpack.c.l.b16 %v349
      %v389 = vunpack.c.h.b16 %v349
      %v390 = vunpack.c.l.b16 %v350
      %v391 = vunpack.c.h.b16 %v350
      %v392 = vunpack.c.l.b16 %v351
      %v393 = vunpack.c.h.b16 %v351
      %v394 = vunpack.c.l.b16 %v352
      %v395 = vunpack.c.h.b16 %v352
      %v396 = vunpack.c.l.b16 %v353
      %v397 = vunpack.c.h.b16 %v353
      %v398 = vunpack.c.l.b16 %v354
      %v399 = vunpack.c.h.b16 %v354
      %v400 = vunpack.c.l.b16 %v355
      %v401 = vunpack.c.h.b16 %v355
      %v402 = vunpack.c.l.b16 %v356
      %v403 = vunpack.c.h.b16 %v356
      %v404 = vunpack.c.l.b16 %v357
      %v405 = vunpack.c.h.b16 %v357
      %v406 = vpack.c.b16 %v376, %v374
      %v407 = vpack.c.b16 %v377, %v375
      %v408 = vpack.c.b16 %v380, %v378
      %v409 = vpack.c.b16 %v381, %v379
      %v410 = vpack.c.b16 %v384, %v382
      %v411 = vpack.c.b16 %v385, %v383
      %v412 = vpack.c.b16 %v388, %v386
      %v413 = vpack.c.b16 %v389, %v387
      %v414 = vpack.c.b16 %v392, %v390
      %v415 = vpack.c.b16 %v393, %v391
      %v416 = vpack.c.b16 %v396, %v394
      %v417 = vpack.c.b16 %v397, %v395
      %v418 = vpack.c.b16 %v400, %v398
      %v419 = vpack.c.b16 %v401, %v399
      %v420 = vpack.c.b16 %v404, %v402
      %v421 = vpack.c.b16 %v405, %v403
      %438 = vmatprep.subr.bf16.mxu0 %v335
      %439 = vmatpush1.bf16.xpose.msra.mxu0 %v334
      %440 = vmatprep.subr.bf16.mxu0 %v337
      %441 = vmatpush1.bf16.xpose.msra.mxu0 %v336
      %442 = vmatprep.subr.bf16.mxu0 %v339
      %443 = vmatpush1.bf16.xpose.msra.mxu0 %v338
      %444 = vmatprep.subr.bf16.mxu0 %v341
      %445 = vmatpush1.bf16.xpose.msra.mxu0 %v340
      %446 = vmatprep.subr.bf16.mxu0 0
      %447 = vmatpush1.bf16.xpose.msra.mxu0 0
      %448 = vmatprep.subr.bf16.mxu0 0
      %449 = vmatpush1.bf16.xpose.msra.mxu0 0
      %450 = vmatprep.subr.bf16.mxu0 0
      %451 = vmatpush1.bf16.xpose.msra.mxu0 0
      %452 = vmatprep.subr.bf16.mxu0 0
      %453 = vmatpush1.bf16.xpose.msra.mxu0 0
      %454 = vmatprep.subr.bf16.mxu0 0
      %455 = vmatpush1.bf16.xpose.msra.mxu0 0
      %456 = vmatprep.subr.bf16.mxu0 0
      %457 = vmatpush1.bf16.xpose.msra.mxu0 0
      %458 = vmatprep.subr.bf16.mxu0 0
      %459 = vmatpush1.bf16.xpose.msra.mxu0 0
      %460 = vmatprep.subr.bf16.mxu0 0
      %461 = vmatpush1.bf16.xpose.msra.mxu0 0
      %462 = vmatprep.subr.bf16.mxu0 0
      %463 = vmatpush1.bf16.xpose.msra.mxu0 0
      %464 = vmatprep.subr.bf16.mxu0 0
      %465 = vmatpush1.bf16.xpose.msra.mxu0 0
      %466 = vmatprep.subr.bf16.mxu0 0
      %467 = vmatpush1.bf16.xpose.msra.mxu0 0
      %468 = vmatprep.subr.bf16.mxu0 0
      %469 = vmatpush1.bf16.xpose.msra.mxu0 0
      %470 = vmatprep.mubr.bf16.mxu0 %v407
      %471 = vmatmul.mubr.bf16.gmra.mrb[0].mxu0 %v406
      %v472 = vpop.f32.mrb[0].mxu0
      %v473 = vadd.f32 0.0, %v472
      %v474 = vpop.f32.mrb[0].mxu0
      %v475 = vpop.f32.mrb[0].mxu0
      %v476 = vadd.f32 0.0, %v475
      %v477 = vpop.f32.mrb[0].mxu0
      %478 = vmatprep.mubr.bf16.mxu0 %v409
      %479 = vmatmul.mubr.bf16.gmra.mrb[0].mxu0 %v408
      %v480 = vpop.f32.mrb[0].mxu0
      %v481 = vadd.f32 0.0, %v480
      %v482 = vpop.f32.mrb[0].mxu0
      %v483 = vpop.f32.mrb[0].mxu0
      %v484 = vadd.f32 0.0, %v483
      %v485 = vpop.f32.mrb[0].mxu0
      %486 = vmatprep.mubr.bf16.mxu0 %v411
      %487 = vmatmul.mubr.bf16.gmra.mrb[0].mxu0 %v410
      %v488 = vpop.f32.mrb[0].mxu0
      %v489 = vadd.f32 0.0, %v488
      %v490 = vpop.f32.mrb[0].mxu0
      %v491 = vpop.f32.mrb[0].mxu0
      %v492 = vadd.f32 0.0, %v491
      %v493 = vpop.f32.mrb[0].mxu0
      %494 = vmatprep.mubr.bf16.mxu0 %v413
      %495 = vmatmul.mubr.bf16.gmra.mrb[0].mxu0 %v412
      %v496 = vpop.f32.mrb[0].mxu0
      %v497 = vadd.f32 0.0, %v496
      %v498 = vpop.f32.mrb[0].mxu0
      %v499 = vpop.f32.mrb[0].mxu0
      %v500 = vadd.f32 0.0, %v499
      %v501 = vpop.f32.mrb[0].mxu0
      %502 = vmatprep.mubr.bf16.mxu0 %v415
      %503 = vmatmul.mubr.bf16.gmra.mrb[0].mxu0 %v414
      %v504 = vpop.f32.mrb[0].mxu0
      %v505 = vadd.f32 0.0, %v504
      %v506 = vpop.f32.mrb[0].mxu0
      %v507 = vpop.f32.mrb[0].mxu0
      %v508 = vadd.f32 0.0, %v507
      %v509 = vpop.f32.mrb[0].mxu0
      %510 = vmatprep.mubr.bf16.mxu0 %v417
      %511 = vmatmul.mubr.bf16.gmra.mrb[0].mxu0 %v416
      %v512 = vpop.f32.mrb[0].mxu0
      %v513 = vadd.f32 0.0, %v512
      %v514 = vpop.f32.mrb[0].mxu0
      %v515 = vpop.f32.mrb[0].mxu0
      %v516 = vadd.f32 0.0, %v515
      %v517 = vpop.f32.mrb[0].mxu0
      %518 = vmatprep.mubr.bf16.mxu0 %v419
      %519 = vmatmul.mubr.bf16.gmra.mrb[0].mxu0 %v418
      %v520 = vpop.f32.mrb[0].mxu0
      %v521 = vadd.f32 0.0, %v520
      %v522 = vpop.f32.mrb[0].mxu0
      %v523 = vpop.f32.mrb[0].mxu0
      %v524 = vadd.f32 0.0, %v523
      %v525 = vpop.f32.mrb[0].mxu0
      %526 = vmatprep.mubr.bf16.mxu0 %v421
      %527 = vmatmul.mubr.bf16.gmra.mrb[0].mxu0 %v420
      %v528 = vpop.f32.mrb[0].mxu0
      %v529 = vadd.f32 0.0, %v528
      %v530 = vpop.f32.mrb[0].mxu0
      %v531 = vpop.f32.mrb[0].mxu0
      %v532 = vadd.f32 0.0, %v531
      %v533 = vpop.f32.mrb[0].mxu0
      %534 = vdwg.mxu0
      %vm535 = vcmask 523264
      %536 = vst.msk [vmem:[%s236] sm:$0xff] %vm535, %v473
      %537 = vst.msk [vmem:[%s236 + $0x8] sm:$0xff] %vm535, %v476
      %538 = vst.msk [vmem:[%s236 + $0x10] sm:$0xff] %vm535, %v481
      %539 = vst.msk [vmem:[%s236 + $0x18] sm:$0xff] %vm535, %v484
      %540 = vst.msk [vmem:[%s236 + $0x20] sm:$0xff] %vm535, %v489
      %541 = vst.msk [vmem:[%s236 + $0x28] sm:$0xff] %vm535, %v492
      %542 = vst.msk [vmem:[%s236 + $0x30] sm:$0xff] %vm535, %v497
      %543 = vst.msk [vmem:[%s236 + $0x38] sm:$0xff] %vm535, %v500
      %544 = vst.msk [vmem:[%s236 + $0x40] sm:$0xff] %vm535, %v505
      %545 = vst.msk [vmem:[%s236 + $0x48] sm:$0xff] %vm535, %v508
      %546 = vst.msk [vmem:[%s236 + $0x50] sm:$0xff] %vm535, %v513
      %547 = vst.msk [vmem:[%s236 + $0x58] sm:$0xff] %vm535, %v516
      %548 = vst.msk [vmem:[%s236 + $0x60] sm:$0xff] %vm535, %v521
      %549 = vst.msk [vmem:[%s236 + $0x68] sm:$0xff] %vm535, %v524
      %550 = vst.msk [vmem:[%s236 + $0x70] sm:$0xff] %vm535, %v529
      %551 = vst.msk [vmem:[%s236 + $0x78] sm:$0xff] %vm535, %v532
      %p552 = scmp.lt.s32.totalorder %s19, 1
      %s553 = scalar_select %p552, %s19, 1
      %p554 = scmp.lt.s32.totalorder %s20, 0
      %s555 = scalar_select %p554, %s20, 0
      %s556 = smul.addr %s553, 16
      %s557 = sadd.s32 %s555, %s556
      %s558 = smul.addr %s557, 8
      %s559 = scalar_lea.vmem %s4, %s558
      // Predicated region
      $region37: #{transition_block_forward.1} parent=35 // pred_check
        %p560 = pneg %p138
      $region38: #{transition_block_forward.1} parent=35 // pred_check_branch
        %562 = sbr.rel (%p560) target = $region40
      $region39: #{transition_block_forward.1} parent=35 // pred_region
        _
      $region40: #{transition_block_forward.1} parent=35 // pred_fallthru
        _
    $region36: #{transition_block_forward.1} parent=5 // pred_fallthru
      _
    %p563 = scmp.le.s32.totalorder 2, %s10
    // Predicated region
    $region41: #{transition_block_forward.1} parent=5 // pred_check
      %p564 = pneg %p563
    $region42: #{transition_block_forward.1} parent=5 // pred_check_branch
      %566 = sbr.rel (%p564) target = $region44
    $region43: #{transition_block_forward.1} parent=5 // pred_region
      %s567 = ssub.s32 %s10, 2
      // Predicated region
      $region45: #{transition_block_forward.1} parent=43 // pred_check
        %p568 = pneg %p144
      $region46: #{transition_block_forward.1} parent=43 // pred_check_branch
        %570 = sbr.rel (%p568) target = $region48
      $region47: #{transition_block_forward.1} parent=43 // pred_region
        %p571 = scmp.lt.s32.totalorder %s21, 1
        %s572 = scalar_select %p571, %s21, 1
        %p573 = scmp.lt.s32.totalorder %s22, 0
        %s574 = scalar_select %p573, %s22, 0
        %s575 = smul.addr %s572, 16
        %s576 = sadd.s32 %s574, %s575
        %s577 = smul.addr %s576, 8
        %s578 = scalar_lea.vmem %s4, %s577
      $region48: #{transition_block_forward.1} parent=43 // pred_fallthru
        _
    $region44: #{transition_block_forward.1} parent=5 // pred_fallthru
      _
  $region6: #{transition_block_forward.1} parent=0 // loop_footer
    %s14 = sadd.s32 1, %s10
  $region7: #{transition_block_forward.1} parent=0 // loop_footer_branch
    %9 = sbr.rel target = $region3
  $region8: #{transition_block_forward.1} parent=0 // loop_exit
    _

</llo_original>
